<compile_context>
chip_gen: v5e
topology: v5e:2x2
jax: 0.10.0
libtpu: 0.0.40
codegen_flags: <defaults>
</compile_context>

<pallas_src>
import math

import jax
import jax.numpy as jnp
from jax.experimental import pallas as pl
from jax.experimental.pallas import tpu as pltpu


# ----------------------------------------------------------------------------
# Weight construction
# ----------------------------------------------------------------------------
def _gaussian_1d_taps(kernel_size, sigma):
    """Per-dimension 1-D taps as plain Python floats, each normalized to sum 1.

    Reproduces the torch module's (non-standard) construction exactly: the 2-D
    kernel there is  outer(g_h, g_w) / sum(outer(g_h, g_w))  with
      g[i] = 1/(sigma*sqrt(2*pi)) * exp(-((i - mean) / (2*sigma))**2),
    which factors exactly into (g_h / sum g_h) (outer) (g_w / sum g_w).
    """
    if isinstance(kernel_size, int):
        kernel_size = [int(kernel_size)] * 2
    if isinstance(sigma, (int, float)):
        sigma = [float(sigma)] * 2
    taps = []
    for size, std in zip(kernel_size, sigma):
        mean = (size - 1) / 2.0
        g = [
            1.0 / (std * math.sqrt(2.0 * math.pi))
            * math.exp(-(((i - mean) / (2.0 * std)) ** 2))
            for i in range(size)
        ]
        s = sum(g)
        taps.append([v / s for v in g])
    return taps  # [taps_h, taps_w]


def make_gaussian_kernel_2d(kernel_size, sigma):
    """Full 2-D kernel, torch-style (used only by the pure-JAX reference)."""
    if isinstance(kernel_size, int):
        kernel_size = [kernel_size] * 2
    if isinstance(sigma, (int, float)):
        sigma = [sigma] * 2
    kernel = jnp.ones((), jnp.float32)
    grids = jnp.meshgrid(
        *[jnp.arange(s, dtype=jnp.float32) for s in kernel_size], indexing="ij"
    )
    for size, std, mgrid in zip(kernel_size, sigma, grids):
        mean = (size - 1) / 2.0
        kernel = kernel * (
            1.0 / (std * math.sqrt(2.0 * math.pi))
            * jnp.exp(-(((mgrid - mean) / (2.0 * std)) ** 2))
        )
    kernel = kernel / jnp.sum(kernel)
    return kernel.astype(jnp.float32)  # (Kh, Kw)


# ----------------------------------------------------------------------------
# Pallas kernel
# ----------------------------------------------------------------------------
def _make_smooth_kernel(taps_h, taps_w, h_out, w_out, w_pass_first):
    """Kernel body with the taps closed over as float immediates."""
    n_h = len(taps_h)
    n_w = len(taps_w)

    def kernel(x_ref, o_ref):
        # x_ref: (B, H, W)  batch of image planes in VMEM.
        # o_ref: (B, H-Kh+1, W-Kw+1)
        x = x_ref[...].astype(jnp.float32)

        if w_pass_first:
            # Horizontal 1-D pass (lane axis) on all H rows.
            acc_w = x[:, :, 0:w_out] * taps_w[0]
            for kw in range(1, n_w):
                acc_w = acc_w + taps_w[kw] * x[:, :, kw:kw + w_out]
            # Vertical 1-D pass (sublane axis), f32 accumulation.
            acc = acc_w[:, 0:h_out, :] * taps_h[0]
            for kh in range(1, n_h):
                acc = acc + taps_h[kh] * acc_w[:, kh:kh + h_out, :]
        else:
            # Vertical 1-D pass (sublane axis) on all W columns.
            acc_h = x[:, 0:h_out, :] * taps_h[0]
            for kh in range(1, n_h):
                acc_h = acc_h + taps_h[kh] * x[:, kh:kh + h_out, :]
            # Horizontal 1-D pass (lane axis), f32 accumulation.
            acc = acc_h[:, :, 0:w_out] * taps_w[0]
            for kw in range(1, n_w):
                acc = acc + taps_w[kw] * acc_h[:, :, kw:kw + w_out]

        o_ref[...] = acc.astype(o_ref.dtype)

    return kernel


def _choose_plane_block(nc, h, w, h_out, w_out, itemsize,
                        budget_bytes=20 * 1024 * 1024):
    """Largest divisor B of NC whose per-step working set fits the VMEM budget.

    Budget is sized conservatively for v7x (64 MiB physical, 32 MiB scoped
    default) so the same choice is also safe on v5e/v6e. Prefers >= 2 grid
    steps so the 'parallel' grid axis can shard across v7x's two TensorCores.
    """
    def footprint(b):
        io_dbuf = 2 * b * (h * w + h_out * w_out) * itemsize  # double-buffered I/O blocks
        # f32 copy of x + 1-D-pass intermediate + final accumulator, with slack
        # for temporaries created by the unrolled adds.
        interm = b * (h * w + max(h * w_out, h_out * w) + h_out * w_out) * 4
        return io_dbuf + int(1.5 * interm)

    divisors = [d for d in range(1, nc + 1) if nc % d == 0]
    fitting = [d for d in divisors if footprint(d) <= budget_bytes]
    if not fitting:
        # TODO(synk): H-tiling with (K-1)-row halo for planes too large for VMEM.
        return 1
    multi_step = [d for d in fitting if nc // d >= 2]
    return max(multi_step) if multi_step else max(fitting)


def gaussian_smoothing(x, kernel_size=5, sigma=1.5):
    """x: (N, C, H, W). Returns (N, C, H-Kh+1, W-Kw+1), same dtype as x."""
    n, c, h, w = x.shape
    taps_h, taps_w = _gaussian_1d_taps(kernel_size, sigma)
    k_h, k_w = len(taps_h), len(taps_w)
    h_out, w_out = h - k_h + 1, w - k_w + 1
    nc = n * c

    x_flat = x.reshape(nc, h, w)
    b = _choose_plane_block(nc, h, w, h_out, w_out, x.dtype.itemsize)
    grid = (nc // b,)

    # Run the pass along the shorter spatial axis first: it operates on the
    # un-shrunk extent of the longer axis, minimizing total VPU element ops.
    w_pass_first = w <= h
    if w_pass_first:
        macs = nc * (k_w * h * w_out + k_h * h_out * w_out)
    else:
        macs = nc * (k_h * h_out * w + k_w * h_out * w_out)
    cost = pl.CostEstimate(
        flops=int(2 * macs),
        transcendentals=0,
        bytes_accessed=int(nc * (h * w + h_out * w_out) * x.dtype.itemsize),
    )

    out_flat = pl.pallas_call(
        _make_smooth_kernel(taps_h, taps_w, h_out, w_out, w_pass_first),
        out_shape=jax.ShapeDtypeStruct((nc, h_out, w_out), x.dtype),
        grid_spec=pltpu.PrefetchScalarGridSpec(
            num_scalar_prefetch=0,
            grid=grid,
            in_specs=[pl.BlockSpec((b, h, w), lambda i: (i, 0, 0))],
            out_specs=pl.BlockSpec((b, h_out, w_out), lambda i: (i, 0, 0)),
        ),
        compiler_params=pltpu.CompilerParams(
            dimension_semantics=("parallel",),
            vmem_limit_bytes=32 * 1024 * 1024,
        ),
        cost_estimate=cost,
    )(x_flat)

    return out_flat.reshape(n, c, h_out, w_out)


# ----------------------------------------------------------------------------
# Pure-JAX reference (matches F.conv2d(..., groups=C) with the torch kernel)
# ----------------------------------------------------------------------------
def _reference(x, kernel_size=5, sigma=1.5):
    n, c, h, w = x.shape
    weights = make_gaussian_kernel_2d(kernel_size, sigma)
    wt = jnp.broadcast_to(
        weights[None, None], (c, 1, weights.shape[0], weights.shape[1])
    )
    return jax.lax.conv_general_dilated(
        x.astype(jnp.float32),
        wt,
        window_strides=(1, 1),
        padding="VALID",
        dimension_numbers=("NCHW", "OIHW", "NCHW"),
        feature_group_count=c,
    ).astype(x.dtype)


if __name__ == "__main__":
    key = jax.random.PRNGKey(0)
    N, C, H, W = 2, 4, 16, 16
    KSIZE, SIGMA = 5, 1.5

    x = jax.random.normal(key, (N, C, H, W), dtype=jnp.float32)

    out = gaussian_smoothing(x, kernel_size=KSIZE, sigma=SIGMA)
    out = jax.block_until_ready(out)

    ref = _reference(x, kernel_size=KSIZE, sigma=SIGMA)
    assert out.shape == (N, C, H - KSIZE + 1, W - KSIZE + 1), out.shape
    assert jnp.allclose(out, ref, atol=1e-5, rtol=1e-5), "mismatch vs reference"

    print("KERNEL_OK")
</pallas_src>

<mosaic_0001>
module attributes {stable_mosaic.version = 11 : i64} {
  func.func @kernel(%arg0: i32, %arg1: memref<4x16x16xf32, #tpu.memory_space<vmem>>, %arg2: memref<4x12x12xf32, #tpu.memory_space<vmem>>) attributes {dimension_semantics = [#tpu.dimension_semantics<parallel>], iteration_bounds = array<i64: 2>, scalar_prefetch = 0 : i64, scratch_operands = 0 : i64, tpu.core_type = #tpu.core_type<tc>, window_params = [{transform_indices = @transform_0, window_bounds = array<i64: 4, 16, 16>}, {transform_indices = @transform_1, window_bounds = array<i64: 4, 12, 12>}]} {
    %c0 = arith.constant 0 : index
    %c0_0 = arith.constant 0 : index
    %c0_1 = arith.constant 0 : index
    %0 = vector.load %arg1[%c0, %c0_0, %c0_1] : memref<4x16x16xf32, #tpu.memory_space<vmem>>, vector<4x16x16xf32>
    %1 = vector.extract_strided_slice %0 {offsets = [0, 0, 0], sizes = [4, 16, 12], strides = [1, 1, 1]} : vector<4x16x16xf32> to vector<4x16x12xf32>
    %cst = arith.constant 0.157459274 : f32
    %2 = vector.broadcast %cst : f32 to vector<4x16x12xf32>
    %3 = arith.mulf %1, %2 : vector<4x16x12xf32>
    %4 = vector.extract_strided_slice %0 {offsets = [0, 0, 1], sizes = [4, 16, 12], strides = [1, 1, 1]} : vector<4x16x16xf32> to vector<4x16x12xf32>
    %cst_2 = arith.constant 0.219752133 : f32
    %5 = vector.broadcast %cst_2 : f32 to vector<4x16x12xf32>
    %6 = arith.mulf %5, %4 : vector<4x16x12xf32>
    %7 = arith.addf %3, %6 : vector<4x16x12xf32>
    %8 = vector.extract_strided_slice %0 {offsets = [0, 0, 2], sizes = [4, 16, 12], strides = [1, 1, 1]} : vector<4x16x16xf32> to vector<4x16x12xf32>
    %cst_3 = arith.constant 0.245577186 : f32
    %9 = vector.broadcast %cst_3 : f32 to vector<4x16x12xf32>
    %10 = arith.mulf %9, %8 : vector<4x16x12xf32>
    %11 = arith.addf %7, %10 : vector<4x16x12xf32>
    %12 = vector.extract_strided_slice %0 {offsets = [0, 0, 3], sizes = [4, 16, 12], strides = [1, 1, 1]} : vector<4x16x16xf32> to vector<4x16x12xf32>
    %cst_4 = arith.constant 0.219752133 : f32
    %13 = vector.broadcast %cst_4 : f32 to vector<4x16x12xf32>
    %14 = arith.mulf %13, %12 : vector<4x16x12xf32>
    %15 = arith.addf %11, %14 : vector<4x16x12xf32>
    %16 = vector.extract_strided_slice %0 {offsets = [0, 0, 4], sizes = [4, 16, 12], strides = [1, 1, 1]} : vector<4x16x16xf32> to vector<4x16x12xf32>
    %cst_5 = arith.constant 0.157459274 : f32
    %17 = vector.broadcast %cst_5 : f32 to vector<4x16x12xf32>
    %18 = arith.mulf %17, %16 : vector<4x16x12xf32>
    %19 = arith.addf %15, %18 : vector<4x16x12xf32>
    %20 = vector.extract_strided_slice %19 {offsets = [0, 0, 0], sizes = [4, 12, 12], strides = [1, 1, 1]} : vector<4x16x12xf32> to vector<4x12x12xf32>
    %cst_6 = arith.constant 0.157459274 : f32
    %21 = vector.broadcast %cst_6 : f32 to vector<4x12x12xf32>
    %22 = arith.mulf %20, %21 : vector<4x12x12xf32>
    %23 = vector.extract_strided_slice %19 {offsets = [0, 1, 0], sizes = [4, 12, 12], strides = [1, 1, 1]} : vector<4x16x12xf32> to vector<4x12x12xf32>
    %cst_7 = arith.constant 0.219752133 : f32
    %24 = vector.broadcast %cst_7 : f32 to vector<4x12x12xf32>
    %25 = arith.mulf %24, %23 : vector<4x12x12xf32>
    %26 = arith.addf %22, %25 : vector<4x12x12xf32>
    %27 = vector.extract_strided_slice %19 {offsets = [0, 2, 0], sizes = [4, 12, 12], strides = [1, 1, 1]} : vector<4x16x12xf32> to vector<4x12x12xf32>
    %cst_8 = arith.constant 0.245577186 : f32
    %28 = vector.broadcast %cst_8 : f32 to vector<4x12x12xf32>
    %29 = arith.mulf %28, %27 : vector<4x12x12xf32>
    %30 = arith.addf %26, %29 : vector<4x12x12xf32>
    %31 = vector.extract_strided_slice %19 {offsets = [0, 3, 0], sizes = [4, 12, 12], strides = [1, 1, 1]} : vector<4x16x12xf32> to vector<4x12x12xf32>
    %cst_9 = arith.constant 0.219752133 : f32
    %32 = vector.broadcast %cst_9 : f32 to vector<4x12x12xf32>
    %33 = arith.mulf %32, %31 : vector<4x12x12xf32>
    %34 = arith.addf %30, %33 : vector<4x12x12xf32>
    %35 = vector.extract_strided_slice %19 {offsets = [0, 4, 0], sizes = [4, 12, 12], strides = [1, 1, 1]} : vector<4x16x12xf32> to vector<4x12x12xf32>
    %cst_10 = arith.constant 0.157459274 : f32
    %36 = vector.broadcast %cst_10 : f32 to vector<4x12x12xf32>
    %37 = arith.mulf %36, %35 : vector<4x12x12xf32>
    %38 = arith.addf %34, %37 : vector<4x12x12xf32>
    %c0_11 = arith.constant 0 : index
    %c0_12 = arith.constant 0 : index
    %c0_13 = arith.constant 0 : index
    %39 = vector.load %arg2[%c0_11, %c0_12, %c0_13] : memref<4x12x12xf32, #tpu.memory_space<vmem>>, vector<4x12x12xf32>
    tpu.vector_store %arg2[%c0_11, %c0_12, %c0_13], %38 {strides = array<i32>} : memref<4x12x12xf32, #tpu.memory_space<vmem>>, vector<4x12x12xf32>,
    return
  }
  func.func @transform_0(%arg0: i32) -> (i32, i32, i32) {
    %c0_i32 = arith.constant 0 : i32
    %c0_i32_0 = arith.constant 0 : i32
    %c0_i32_1 = arith.constant 0 : i32
    return %arg0, %c0_i32, %c0_i32_0 : i32, i32, i32
  }
  func.func @transform_1(%arg0: i32) -> (i32, i32, i32) {
    %c0_i32 = arith.constant 0 : i32
    %c0_i32_0 = arith.constant 0 : i32
    %c0_i32_1 = arith.constant 0 : i32
    return %arg0, %c0_i32, %c0_i32_0 : i32, i32, i32
  }
}

</mosaic_0001>

<llo_original>
// kernel: tpu_custom_call.1
$region0: #{tpu_custom_call.1}
  #allocation0 [shape = 'u32[]', space=smem, size = 0x4, offset = 0x4, fixed_abs, tag = 'smem constant byte address 0x4 - core index']
  #allocation1 [shape = 'u32[72,128]{1,0:T(1,128)}', space=vmem, size = 0x9000, scoped, tag = 'internal scratch']
  %s0 = inlined_call_operand.hbm [shape: f32[8,16,16], index: 0, kind: input, shape index: {}]
  %s1 = inlined_call_operand.vmem [shape: f32[8,12,12], index: 1, kind: output, shape index: {}]
  %s2 = sld [smem:[#allocation0]]
  $region41: #{tpu_custom_call.1} parent=0
    _
  %s4 = ssub.s32 1, %s2
  %s5 = scalar_select 0, %s4, %s2
  $region1: #{tpu_custom_call.1} parent=0
    #allocation2 [shape = 'u8[65536]{0}', space=vmem, size = 0x10000, scoped, tag = 'input window, operand 0']
    #allocation3 [shape = 's32[2]{0}', space=sflag, size = 0x8, scoped, tag = 'scoped memory for tpu_custom_call.1']
    %6 = vsyncpa [#allocation3], 0
    %s7 = scalar_lea.sflag [#allocation3], 1
    %8 = vsyncpa %s7, 0
    loop: start=0, step=1, limit=4
    $region2: #{tpu_custom_call.1} parent=1 // loop_pre_header
      _
    $region3: #{tpu_custom_call.1} parent=1 // loop_header
      %s10 = sphi 0, %s14
      %p11 = scmp.ge.s32.totalorder %s10, 4
      %s20 = sphi 0, %s22
      %s23 = sphi 0, %s20
      %s24 = sphi 0, %s23
      %s40 = sphi 0, %s24
      %s46 = sphi 0, %s48
      %s49 = sphi 0, %s46
      %s50 = sphi 0, %s49
      %s66 = sphi 0, %s50
    $region4: #{tpu_custom_call.1} parent=1 // loop_header_branch
      %13 = sbr.rel (%p11) target = $region8
    $region5: #{tpu_custom_call.1} parent=1 // loop_body
      %s15 = ssub.s32 %s10, 1
      %s16 = ssub.s32 %s10, 2
      %s17 = sadd.s32 %s10, 1
      %s18 = ssub.s32 %s10, %s17
      %p19 = scmp.eq.s32.totalorder %s18, 0
      %s21 = sadd.s32 %s20, 1
      %s22 = scalar_select %p19, %s20, %s21
      %p25 = pneg %p19
      %p26 = scmp.eq.s32.totalorder %s10, 1
      %p27 = por %p25, %p26
      %p28 = scmp.ne.s32.totalorder %s20, %s23
      %p29 = scmp.eq.s32.totalorder %s10, 0
      %p30 = por %p28, %p29
      %p31 = scmp.ne.s32.totalorder %s20, %s23
      %p32 = scmp.eq.s32.totalorder %s15, 1
      %p33 = por %p31, %p32
      %p34 = scmp.ne.s32.totalorder %s23, %s24
      %p35 = scmp.eq.s32.totalorder %s15, 0
      %p36 = por %p34, %p35
      %p37 = scmp.ne.s32.totalorder %s23, %s24
      %p38 = scmp.eq.s32.totalorder %s16, 1
      %p39 = por %p37, %p38
      %p41 = scmp.ne.s32.totalorder %s24, %s40
      %p42 = scmp.eq.s32.totalorder %s16, 0
      %p43 = por %p41, %p42
      %s44 = ssub.s32 %s10, %s17
      %p45 = scmp.eq.s32.totalorder %s44, 0
      %s47 = sadd.s32 %s46, 1
      %s48 = scalar_select %p45, %s46, %s47
      %p51 = pneg %p45
      %p52 = scmp.eq.s32.totalorder %s10, 1
      %p53 = por %p51, %p52
      %p54 = scmp.ne.s32.totalorder %s46, %s49
      %p55 = scmp.eq.s32.totalorder %s10, 0
      %p56 = por %p54, %p55
      %p57 = scmp.ne.s32.totalorder %s46, %s49
      %p58 = scmp.eq.s32.totalorder %s15, 1
      %p59 = por %p57, %p58
      %p60 = scmp.ne.s32.totalorder %s49, %s50
      %p61 = scmp.eq.s32.totalorder %s15, 0
      %p62 = por %p60, %p61
      %p63 = scmp.ne.s32.totalorder %s49, %s50
      %p64 = scmp.eq.s32.totalorder %s16, 1
      %p65 = por %p63, %p64
      %p67 = scmp.ne.s32.totalorder %s50, %s66
      %p68 = scmp.eq.s32.totalorder %s16, 0
      %p69 = por %p67, %p68
      %p70 = scmp.le.s32.totalorder 1, %s10
      %p71 = scmp.lt.s32.totalorder %s10, 3
      %p72 = pnand %p70, %p71
      %p73 = pneg %p72
      // Predicated region
      $region9: #{tpu_custom_call.1} parent=5 // pred_check
        _
      $region10: #{tpu_custom_call.1} parent=5 // pred_check_branch
        %75 = sbr.rel (%p72) target = $region12
      $region11: #{tpu_custom_call.1} parent=5 // pred_region
        %s76 = ssub.s32 %s10, 1
      $region12: #{tpu_custom_call.1} parent=5 // pred_fallthru
        _
      %p77 = scmp.lt.s32.totalorder %s10, 2
      // Predicated region
      $region13: #{tpu_custom_call.1} parent=5 // pred_check
        %p78 = pneg %p77
      $region14: #{tpu_custom_call.1} parent=5 // pred_check_branch
        %80 = sbr.rel (%p78) target = $region16
      $region15: #{tpu_custom_call.1} parent=5 // pred_region
        // Predicated region
        $region17: #{tpu_custom_call.1} parent=15 // pred_check
          %p81 = pneg %p30
        $region18: #{tpu_custom_call.1} parent=15 // pred_check_branch
          %83 = sbr.rel (%p81) target = $region20
        $region19: #{tpu_custom_call.1} parent=15 // pred_region
          %s84 = sand.u32 %s20, 1
          %s85 = scalar_lea.sflag [#allocation3], %s84
          %s86 = sand.u32 %s20, 1
          %s87 = smul.addr %s86, 64
          %s88 = scalar_lea.vmem [#allocation2], %s87
          %s89 = smul.u32 4, %s10
          %91 = vsyncadd %s85, 0
          %s92 = smul.addr %s89, 2
          %s93 = smul.addr %s92, 8
          %s94 = scalar_lea.hbm %s0, %s93
          %s95 = sshll.u32 %s94, 4
          %s96 = int_to_ptr.hbm [resolvable:$true] %s95
          %s97 = sshll.u32 %s88, 4
          %s98 = int_to_ptr.vmem [resolvable:$true] %s97
          %103 = dma.hbm_to_vmem [thread:$0]  %s96, 1024, %s98, %s85, 128, 128, 8
        $region20: #{tpu_custom_call.1} parent=15 // pred_fallthru
          _
      $region16: #{tpu_custom_call.1} parent=5 // pred_fallthru
        _
      %p104 = scmp.le.s32.totalorder 1, %s10
      %p105 = scmp.lt.s32.totalorder %s10, 3
      %p106 = pnand %p104, %p105
      %p107 = pneg %p106
      // Predicated region
      $region21: #{tpu_custom_call.1} parent=5 // pred_check
        _
      $region22: #{tpu_custom_call.1} parent=5 // pred_check_branch
        %109 = sbr.rel (%p106) target = $region24
      $region23: #{tpu_custom_call.1} parent=5 // pred_region
        %s110 = ssub.s32 %s10, 1
        %s111 = sand.u32 %s23, 1
        %s112 = scalar_lea.sflag [#allocation3], %s111
        %s113 = sand.u32 %s23, 1
        %s114 = smul.addr %s113, 64
        %s115 = scalar_lea.vmem [#allocation2], %s114
        // Predicated region
        $region25: #{tpu_custom_call.1} parent=23 // pred_check
          %p116 = pneg %p36
        $region26: #{tpu_custom_call.1} parent=23 // pred_check_branch
          %118 = sbr.rel (%p116) target = $region28
        $region27: #{tpu_custom_call.1} parent=23 // pred_region
          %120 = dma.done %s112, 1024
        $region28: #{tpu_custom_call.1} parent=23 // pred_fallthru
          _
        %s121 = sand.u32 %s23, 1
        %s122 = scalar_lea.sflag [#allocation3], %s121
        %s123 = sand.u32 %s23, 1
        %s124 = smul.addr %s123, 64
        %s125 = scalar_lea.vmem [#allocation2], %s124
        %p126 = pneg %p36
        %p127 = pneg %p33
        %p128 = pneg %p62
        %p129 = pneg %p59
        %s130 = smul.u32 4, %s15
        %p131 = scmp.lt.s32.totalorder %s130, 7
        %s132 = scalar_select %p131, %s130, 7
        %s133 = smul.addr %s132, 2
        %s134 = smul.addr %s133, 8
        %s135 = scalar_lea.vmem %s1, %s134
        %s136 = smul.u32 4, %s15
        %s137 = smul.u32 4, %s15
        %p138 = scmp.lt.s32.totalorder %s137, 7
        %s139 = scalar_select %p138, %s137, 7
        %s140 = smul.addr %s139, 2
        %s141 = smul.addr %s140, 8
        %s142 = scalar_lea.vmem %s1, %s141
        %s143 = smul.u32 4, %s15
        %v144 = vld [vmem:[%s115] sm:$0xff]
        %v145 = vld [vmem:[%s115 + $0x8] sm:$0xff]
        %v146 = vld [vmem:[%s115 + $0x10] sm:$0xff]
        %v147 = vld [vmem:[%s115 + $0x18] sm:$0xff]
        %v148 = vld [vmem:[%s115 + $0x20] sm:$0xff]
        %v149 = vld [vmem:[%s115 + $0x28] sm:$0xff]
        %v150 = vld [vmem:[%s115 + $0x30] sm:$0xff]
        %v151 = vld [vmem:[%s115 + $0x38] sm:$0xff]
        %v152 = vmul.f32 %v144, 0.15745927
        %v153 = vmul.f32 %v145, 0.15745927
        %v154 = vmul.f32 %v146, 0.15745927
        %v155 = vmul.f32 %v147, 0.15745927
        %v156 = vmul.f32 %v148, 0.15745927
        %v157 = vmul.f32 %v149, 0.15745927
        %v158 = vmul.f32 %v150, 0.15745927
        %v159 = vmul.f32 %v151, 0.15745927
        %v160 = vmul.f32 %v144, 0.21975213
        %v161 = vmul.f32 %v145, 0.21975213
        %v162 = vmul.f32 %v146, 0.21975213
        %v163 = vmul.f32 %v147, 0.21975213
        %v164 = vmul.f32 %v148, 0.21975213
        %v165 = vmul.f32 %v149, 0.21975213
        %v166 = vmul.f32 %v150, 0.21975213
        %v167 = vmul.f32 %v151, 0.21975213
        %176 = vrot.lane.b32.xlu0 %v160, 127
        %v177 = vpop.permute.xlu0 %176
        %178 = vrot.lane.b32.xlu0 %v161, 127
        %v179 = vpop.permute.xlu0 %178
        %180 = vrot.lane.b32.xlu0 %v162, 127
        %v181 = vpop.permute.xlu0 %180
        %182 = vrot.lane.b32.xlu0 %v163, 127
        %v183 = vpop.permute.xlu0 %182
        %184 = vrot.lane.b32.xlu0 %v164, 127
        %v185 = vpop.permute.xlu0 %184
        %186 = vrot.lane.b32.xlu0 %v165, 127
        %v187 = vpop.permute.xlu0 %186
        %188 = vrot.lane.b32.xlu0 %v166, 127
        %v189 = vpop.permute.xlu0 %188
        %190 = vrot.lane.b32.xlu0 %v167, 127
        %v191 = vpop.permute.xlu0 %190
        %v200 = vadd.f32 %v152, %v177
        %v201 = vadd.f32 %v153, %v179
        %v202 = vadd.f32 %v154, %v181
        %v203 = vadd.f32 %v155, %v183
        %v204 = vadd.f32 %v156, %v185
        %v205 = vadd.f32 %v157, %v187
        %v206 = vadd.f32 %v158, %v189
        %v207 = vadd.f32 %v159, %v191
        %v208 = vmul.f32 %v144, 0.24557719
        %v209 = vmul.f32 %v145, 0.24557719
        %v210 = vmul.f32 %v146, 0.24557719
        %v211 = vmul.f32 %v147, 0.24557719
        %v212 = vmul.f32 %v148, 0.24557719
        %v213 = vmul.f32 %v149, 0.24557719
        %v214 = vmul.f32 %v150, 0.24557719
        %v215 = vmul.f32 %v151, 0.24557719
        %224 = vrot.lane.b32.xlu0 %v208, 126
        %v225 = vpop.permute.xlu0 %224
        %226 = vrot.lane.b32.xlu0 %v209, 126
        %v227 = vpop.permute.xlu0 %226
        %228 = vrot.lane.b32.xlu0 %v210, 126
        %v229 = vpop.permute.xlu0 %228
        %230 = vrot.lane.b32.xlu0 %v211, 126
        %v231 = vpop.permute.xlu0 %230
        %232 = vrot.lane.b32.xlu0 %v212, 126
        %v233 = vpop.permute.xlu0 %232
        %234 = vrot.lane.b32.xlu0 %v213, 126
        %v235 = vpop.permute.xlu0 %234
        %236 = vrot.lane.b32.xlu0 %v214, 126
        %v237 = vpop.permute.xlu0 %236
        %238 = vrot.lane.b32.xlu0 %v215, 126
        %v239 = vpop.permute.xlu0 %238
        %v248 = vadd.f32 %v200, %v225
        %v249 = vadd.f32 %v201, %v227
        %v250 = vadd.f32 %v202, %v229
        %v251 = vadd.f32 %v203, %v231
        %v252 = vadd.f32 %v204, %v233
        %v253 = vadd.f32 %v205, %v235
        %v254 = vadd.f32 %v206, %v237
        %v255 = vadd.f32 %v207, %v239
        %256 = vrot.lane.b32.xlu0 %v160, 125
        %v257 = vpop.permute.xlu0 %256
        %258 = vrot.lane.b32.xlu0 %v161, 125
        %v259 = vpop.permute.xlu0 %258
        %260 = vrot.lane.b32.xlu0 %v162, 125
        %v261 = vpop.permute.xlu0 %260
        %262 = vrot.lane.b32.xlu0 %v163, 125
        %v263 = vpop.permute.xlu0 %262
        %264 = vrot.lane.b32.xlu0 %v164, 125
        %v265 = vpop.permute.xlu0 %264
        %266 = vrot.lane.b32.xlu0 %v165, 125
        %v267 = vpop.permute.xlu0 %266
        %268 = vrot.lane.b32.xlu0 %v166, 125
        %v269 = vpop.permute.xlu0 %268
        %270 = vrot.lane.b32.xlu0 %v167, 125
        %v271 = vpop.permute.xlu0 %270
        %v280 = vadd.f32 %v248, %v257
        %v281 = vadd.f32 %v249, %v259
        %v282 = vadd.f32 %v250, %v261
        %v283 = vadd.f32 %v251, %v263
        %v284 = vadd.f32 %v252, %v265
        %v285 = vadd.f32 %v253, %v267
        %v286 = vadd.f32 %v254, %v269
        %v287 = vadd.f32 %v255, %v271
        %296 = vrot.lane.b32.xlu0 %v152, 124
        %v297 = vpop.permute.xlu0 %296
        %298 = vrot.lane.b32.xlu0 %v153, 124
        %v299 = vpop.permute.xlu0 %298
        %300 = vrot.lane.b32.xlu0 %v154, 124
        %v301 = vpop.permute.xlu0 %300
        %302 = vrot.lane.b32.xlu0 %v155, 124
        %v303 = vpop.permute.xlu0 %302
        %304 = vrot.lane.b32.xlu0 %v156, 124
        %v305 = vpop.permute.xlu0 %304
        %306 = vrot.lane.b32.xlu0 %v157, 124
        %v307 = vpop.permute.xlu0 %306
        %308 = vrot.lane.b32.xlu0 %v158, 124
        %v309 = vpop.permute.xlu0 %308
        %310 = vrot.lane.b32.xlu0 %v159, 124
        %v311 = vpop.permute.xlu0 %310
        %v320 = vadd.f32 %v280, %v297
        %v321 = vadd.f32 %v281, %v299
        %v322 = vadd.f32 %v282, %v301
        %v323 = vadd.f32 %v283, %v303
        %v324 = vadd.f32 %v284, %v305
        %v325 = vadd.f32 %v285, %v307
        %v326 = vadd.f32 %v286, %v309
        %v327 = vadd.f32 %v287, %v311
        %v328 = vmul.f32 %v320, 0.15745927
        %v329 = vmul.f32 %v321, 0.15745927
        %v330 = vmul.f32 %v322, 0.15745927
        %v331 = vmul.f32 %v323, 0.15745927
        %v332 = vmul.f32 %v324, 0.15745927
        %v333 = vmul.f32 %v325, 0.15745927
        %v334 = vmul.f32 %v326, 0.15745927
        %v335 = vmul.f32 %v327, 0.15745927
        %v336 = vmul.f32 %v320, 0.21975213
        %v337 = vmul.f32 %v321, 0.21975213
        %v338 = vmul.f32 %v322, 0.21975213
        %v339 = vmul.f32 %v323, 0.21975213
        %v340 = vmul.f32 %v324, 0.21975213
        %v341 = vmul.f32 %v325, 0.21975213
        %v342 = vmul.f32 %v326, 0.21975213
        %v343 = vmul.f32 %v327, 0.21975213
        %vm352 = vcmask 1046528
        %v353 = vrot.slane %v336, 1
        %v354 = vrot.slane %v337, 1
        %v355 = vsel %vm352, %v353, %v354
        %v356 = vrot.slane %v338, 1
        %v357 = vrot.slane %v339, 1
        %v358 = vsel %vm352, %v356, %v357
        %v359 = vrot.slane %v340, 1
        %v360 = vrot.slane %v341, 1
        %v361 = vsel %vm352, %v359, %v360
        %v362 = vrot.slane %v342, 1
        %v363 = vrot.slane %v343, 1
        %v364 = vsel %vm352, %v362, %v363
        %v373 = vadd.f32 %v328, %v355
        %v374 = vadd.f32 %v329, %v354
        %v375 = vadd.f32 %v330, %v358
        %v376 = vadd.f32 %v331, %v357
        %v377 = vadd.f32 %v332, %v361
        %v378 = vadd.f32 %v333, %v360
        %v379 = vadd.f32 %v334, %v364
        %v380 = vadd.f32 %v335, %v363
        %v381 = vmul.f32 %v320, 0.24557719
        %v382 = vmul.f32 %v321, 0.24557719
        %v383 = vmul.f32 %v322, 0.24557719
        %v384 = vmul.f32 %v323, 0.24557719
        %v385 = vmul.f32 %v324, 0.24557719
        %v386 = vmul.f32 %v325, 0.24557719
        %v387 = vmul.f32 %v326, 0.24557719
        %v388 = vmul.f32 %v327, 0.24557719
        %vm397 = vcmask 1045504
        %v398 = vrot.slane %v381, 2
        %v399 = vrot.slane %v382, 2
        %v400 = vsel %vm397, %v398, %v399
        %v401 = vrot.slane %v383, 2
        %v402 = vrot.slane %v384, 2
        %v403 = vsel %vm397, %v401, %v402
        %v404 = vrot.slane %v385, 2
        %v405 = vrot.slane %v386, 2
        %v406 = vsel %vm397, %v404, %v405
        %v407 = vrot.slane %v387, 2
        %v408 = vrot.slane %v388, 2
        %v409 = vsel %vm397, %v407, %v408
        %v418 = vadd.f32 %v373, %v400
        %v419 = vadd.f32 %v374, %v399
        %v420 = vadd.f32 %v375, %v403
        %v421 = vadd.f32 %v376, %v402
        %v422 = vadd.f32 %v377, %v406
        %v423 = vadd.f32 %v378, %v405
        %v424 = vadd.f32 %v379, %v409
        %v425 = vadd.f32 %v380, %v408
        %vm426 = vcmask 1044480
        %v427 = vrot.slane %v336, 3
        %v428 = vrot.slane %v337, 3
        %v429 = vsel %vm426, %v427, %v428
        %v430 = vrot.slane %v338, 3
        %v431 = vrot.slane %v339, 3
        %v432 = vsel %vm426, %v430, %v431
        %v433 = vrot.slane %v340, 3
        %v434 = vrot.slane %v341, 3
        %v435 = vsel %vm426, %v433, %v434
        %v436 = vrot.slane %v342, 3
        %v437 = vrot.slane %v343, 3
        %v438 = vsel %vm426, %v436, %v437
        %v447 = vadd.f32 %v418, %v429
        %v448 = vadd.f32 %v419, %v428
        %v449 = vadd.f32 %v420, %v432
        %v450 = vadd.f32 %v421, %v431
        %v451 = vadd.f32 %v422, %v435
        %v452 = vadd.f32 %v423, %v434
        %v453 = vadd.f32 %v424, %v438
        %v454 = vadd.f32 %v425, %v437
        %vm463 = vcmask 1043456
        %v464 = vrot.slane %v328, 4
        %v465 = vrot.slane %v329, 4
        %v466 = vsel %vm463, %v464, %v465
        %v467 = vrot.slane %v330, 4
        %v468 = vrot.slane %v331, 4
        %v469 = vsel %vm463, %v467, %v468
        %v470 = vrot.slane %v332, 4
        %v471 = vrot.slane %v333, 4
        %v472 = vsel %vm463, %v470, %v471
        %v473 = vrot.slane %v334, 4
        %v474 = vrot.slane %v335, 4
        %v475 = vsel %vm463, %v473, %v474
        %v484 = vadd.f32 %v447, %v466
        %v485 = vadd.f32 %v448, %v465
        %v486 = vadd.f32 %v449, %v469
        %v487 = vadd.f32 %v450, %v468
        %v488 = vadd.f32 %v451, %v472
        %v489 = vadd.f32 %v452, %v471
        %v490 = vadd.f32 %v453, %v475
        %v491 = vadd.f32 %v454, %v474
        %vm492 = vcmask 97280
        %493 = vst.msk [vmem:[%s142] sm:$0xff] %vm492, %v484
        %vm494 = vcmask 93184
        %495 = vst.msk [vmem:[%s142 + $0x8] sm:$0xf] %vm494, %v485
        %496 = vst.msk [vmem:[%s142 + $0x10] sm:$0xff] %vm492, %v486
        %497 = vst.msk [vmem:[%s142 + $0x18] sm:$0xf] %vm494, %v487
        %498 = vst.msk [vmem:[%s142 + $0x20] sm:$0xff] %vm492, %v488
        %499 = vst.msk [vmem:[%s142 + $0x28] sm:$0xf] %vm494, %v489
        %500 = vst.msk [vmem:[%s142 + $0x30] sm:$0xff] %vm492, %v490
        %501 = vst.msk [vmem:[%s142 + $0x38] sm:$0xf] %vm494, %v491
        %s502 = smul.u32 4, %s15
        %p503 = scmp.lt.s32.totalorder %s502, 7
        %s504 = scalar_select %p503, %s502, 7
        %s505 = smul.addr %s504, 2
        %s506 = smul.addr %s505, 8
        %s507 = scalar_lea.vmem %s1, %s506
        // Predicated region
        $region29: #{tpu_custom_call.1} parent=23 // pred_check
          %p508 = pneg %p59
        $region30: #{tpu_custom_call.1} parent=23 // pred_check_branch
          %510 = sbr.rel (%p508) target = $region32
        $region31: #{tpu_custom_call.1} parent=23 // pred_region
          %s511 = smul.u32 4, %s15
        $region32: #{tpu_custom_call.1} parent=23 // pred_fallthru
          _
      $region24: #{tpu_custom_call.1} parent=5 // pred_fallthru
        _
      %p512 = scmp.le.s32.totalorder 2, %s10
      // Predicated region
      $region33: #{tpu_custom_call.1} parent=5 // pred_check
        %p513 = pneg %p512
      $region34: #{tpu_custom_call.1} parent=5 // pred_check_branch
        %515 = sbr.rel (%p513) target = $region36
      $region35: #{tpu_custom_call.1} parent=5 // pred_region
        %s516 = ssub.s32 %s10, 2
        // Predicated region
        $region37: #{tpu_custom_call.1} parent=35 // pred_check
          %p517 = pneg %p65
        $region38: #{tpu_custom_call.1} parent=35 // pred_check_branch
          %519 = sbr.rel (%p517) target = $region40
        $region39: #{tpu_custom_call.1} parent=35 // pred_region
          %s520 = smul.u32 4, %s16
          %p521 = scmp.lt.s32.totalorder %s520, 7
          %s522 = scalar_select %p521, %s520, 7
          %s523 = smul.addr %s522, 2
          %s524 = smul.addr %s523, 8
          %s525 = scalar_lea.vmem %s1, %s524
        $region40: #{tpu_custom_call.1} parent=35 // pred_fallthru
          _
      $region36: #{tpu_custom_call.1} parent=5 // pred_fallthru
        _
    $region6: #{tpu_custom_call.1} parent=1 // loop_footer
      %s14 = sadd.s32 1, %s10
    $region7: #{tpu_custom_call.1} parent=1 // loop_footer_branch
      %9 = sbr.rel target = $region3
    $region8: #{tpu_custom_call.1} parent=1 // loop_exit
      _
    %526 = vsyncpa [#allocation3], 1
    %s527 = scalar_lea.sflag [#allocation3], 1
    %528 = vsyncpa %s527, 1

</llo_original>
